<compile_context>
chip_gen: v6e
topology: v6e:2x2x1
jax: 0.10.0
libtpu: 0.0.40
codegen_flags: <defaults>
</compile_context>

<pallas_src>
import functools

import jax
import jax.numpy as jnp
from jax.experimental import pallas as pl
from jax.experimental.pallas import tpu as pltpu

EPS = 1e-5


def _pick_feature_tile(d):
    """Largest feature tile (multiple of 128) dividing d, else the full d."""
    for t in (256, 128):
        if d % t == 0:
            return t
    return d


def metacaru_kernel(img_full_ref, meta_ref, img_tile_ref,
                    w_img_ref, w_meta_ref, pvec_ref, out_ref):
    B = img_full_ref.shape[0]
    tn = out_ref.shape[1]              # feature-tile width
    inv_b = 1.0 / B

    img = img_full_ref[...].astype(jnp.float32)     # (B, D_img)  : matmul LHS
    meta = meta_ref[...].astype(jnp.float32)        # (B, D_meta) : matmul LHS
    img_t = img_tile_ref[...].astype(jnp.float32)   # (B, tn)     : residual blend

    pv = pvec_ref[...].astype(jnp.float32)          # (8, 2*tn) packed vectors
    b_img, b_meta = pv[0:1, :], pv[1:2, :]
    g_img, g_meta = pv[2:3, :], pv[3:4, :]
    bt_img, bt_meta = pv[4:5, :], pv[5:6, :]
    g_bn, bt_bn = pv[6:7, :tn], pv[7:8, :tn]

    def bn_cols(y, gamma, beta):
        # One-pass per-column (feature) batch statistics: var = E[x^2] - mu^2.
        s = jnp.sum(y, axis=0, keepdims=True)
        sq = jnp.sum(y * y, axis=0, keepdims=True)
        mu = s * inv_b
        var = sq * inv_b - mu * mu
        return (y - mu) * jax.lax.rsqrt(var + EPS) * gamma + beta

    # One matmul per LHS: N = 2*tn (Fi||Gi tiles and Fm||Gm tiles interleaved).
    w_img = w_img_ref[...]
    w_meta = w_meta_ref[...]
    y_img = jnp.dot(img.astype(w_img.dtype), w_img,
                    preferred_element_type=jnp.float32) + b_img     # (B, 2*tn)
    y_meta = jnp.dot(meta.astype(w_meta.dtype), w_meta,
                     preferred_element_type=jnp.float32) + b_meta   # (B, 2*tn)

    # Fused BN over the concatenated gate pairs (per-column stats are exact).
    y_img = bn_cols(y_img, g_img, bt_img)
    y_meta = bn_cols(y_meta, g_meta, bt_meta)

    fi, gi = y_img[:, :tn], y_img[:, tn:]
    fm, gm = y_meta[:, :tn], y_meta[:, tn:]

    p = fm
    # Issue all three transcendentals before consuming any (single EUP slot).
    n = jnp.tanh(fi + p)
    z = jax.nn.sigmoid(gm + gi)
    sp = jax.nn.sigmoid(p)

    l = sp * z
    h = (1.0 - l) * img_t + l * n

    out_ref[...] = bn_cols(h, g_bn, bt_bn).astype(out_ref.dtype)


def init_params(key, img_dim, meta_dim, dtype=jnp.float32):
    """Deterministic init mirroring nn.Linear default + BN gamma=1/beta=0."""
    keys = jax.random.split(key, 8)

    def linear(kw, kb, fan_in, fan_out):
        bound = 1.0 / jnp.sqrt(fan_in)
        # stored as (in, out) so the kernel computes x @ W + b
        w = jax.random.uniform(kw, (fan_in, fan_out), dtype, -bound, bound)
        b = jax.random.uniform(kb, (1, fan_out), dtype, -bound, bound)
        return w, b

    def bn(dim):
        return jnp.ones((1, dim), dtype), jnp.zeros((1, dim), dtype)

    params = {}
    params["Fi"] = (*linear(keys[0], keys[1], img_dim, img_dim), *bn(img_dim))
    params["Gi"] = (*linear(keys[2], keys[3], img_dim, img_dim), *bn(img_dim))
    params["Fm"] = (*linear(keys[4], keys[5], meta_dim, img_dim), *bn(img_dim))
    params["Gm"] = (*linear(keys[6], keys[7], meta_dim, img_dim), *bn(img_dim))
    params["bn"] = bn(img_dim)
    return params


def _interleave_cols(a, b, nt, tn):
    """(R, D), (R, D) -> (R, 2*D) ordered per feature-tile as [a_tile || b_tile]."""
    r = a.shape[0]
    a = a.reshape(r, nt, tn)
    b = b.reshape(r, nt, tn)
    return jnp.concatenate([a, b], axis=2).reshape(r, 2 * nt * tn)


@functools.partial(jax.jit, static_argnames=("weight_dtype",))
def metacaru_bn(img, meta, params, weight_dtype=None):
    B, D = img.shape
    Dm = meta.shape[1]
    tn = _pick_feature_tile(D)
    nt = D // tn

    wfi, bfi, gfi, btfi = params["Fi"]
    wgi, bgi, ggi, btgi = params["Gi"]
    wfm, bfm, gfm, btfm = params["Fm"]
    wgm, bgm, ggm, btgm = params["Gm"]
    gbn, btbn = params["bn"]

    # Fused, tile-interleaved weights: one matmul per LHS inside the kernel.
    w_img = _interleave_cols(wfi, wgi, nt, tn)     # (D, 2*D)
    w_meta = _interleave_cols(wfm, wgm, nt, tn)    # (Dm, 2*D)
    if weight_dtype is not None:                   # bf16 recommended at large D
        w_img = w_img.astype(weight_dtype)
        w_meta = w_meta.astype(weight_dtype)

    # All 14 per-feature vectors packed into a single (8, 2*D) f32 array.
    zeros = jnp.zeros((1, D), jnp.float32)
    f32 = jnp.float32
    pvec = jnp.concatenate([
        _interleave_cols(bfi.astype(f32), bgi.astype(f32), nt, tn),
        _interleave_cols(bfm.astype(f32), bgm.astype(f32), nt, tn),
        _interleave_cols(gfi.astype(f32), ggi.astype(f32), nt, tn),
        _interleave_cols(gfm.astype(f32), ggm.astype(f32), nt, tn),
        _interleave_cols(btfi.astype(f32), btgi.astype(f32), nt, tn),
        _interleave_cols(btfm.astype(f32), btgm.astype(f32), nt, tn),
        _interleave_cols(gbn.astype(f32), zeros, nt, tn),
        _interleave_cols(btbn.astype(f32), zeros, nt, tn),
    ], axis=0)                                      # (8, 2*D)

    in_specs = [
        pl.BlockSpec((B, D), lambda j: (0, 0)),        # img (full, matmul LHS)
        pl.BlockSpec((B, Dm), lambda j: (0, 0)),       # meta (full, matmul LHS)
        pl.BlockSpec((B, tn), lambda j: (0, j)),       # img feature tile (blend)
        pl.BlockSpec((D, 2 * tn), lambda j: (0, j)),   # fused img-side weights
        pl.BlockSpec((Dm, 2 * tn), lambda j: (0, j)),  # fused meta-side weights
        pl.BlockSpec((8, 2 * tn), lambda j: (0, j)),   # packed bias/gamma/beta
    ]
    out_specs = pl.BlockSpec((B, tn), lambda j: (0, j))

    return pl.pallas_call(
        metacaru_kernel,
        out_shape=jax.ShapeDtypeStruct((B, D), img.dtype),
        grid=(nt,),
        in_specs=in_specs,
        out_specs=out_specs,
        compiler_params=pltpu.CompilerParams(
            dimension_semantics=("parallel",),       # shards across v7x's 2 TCs
            vmem_limit_bytes=32 * 1024 * 1024,       # explicit, v7x-safe
        ),
    )(img, meta, img, w_img, w_meta, pvec)


def metacaru_bn_ref(img, meta, params):
    """Plain-JAX reference (standard two-pass BN) for correctness checking."""
    def bn(x, g, b):
        mu = jnp.mean(x, axis=0, keepdims=True)
        var = jnp.mean((x - mu) ** 2, axis=0, keepdims=True)
        return (x - mu) * jax.lax.rsqrt(var + EPS) * g + b

    def lin_bn(x, w, bias, g, beta):
        return bn(x @ w + bias, g, beta)

    fi = lin_bn(img, *params["Fi"])
    gi = lin_bn(img, *params["Gi"])
    fm = lin_bn(meta, *params["Fm"])
    gm = lin_bn(meta, *params["Gm"])
    p = fm
    n = jnp.tanh(fi + p)
    z = jax.nn.sigmoid(gm + gi)
    l = jax.nn.sigmoid(p) * z
    h = (1.0 - l) * img + l * n
    return bn(h, *params["bn"])


if __name__ == "__main__":
    B, IMG_DIM, META_DIM = 8, 32, 16

    key = jax.random.PRNGKey(0)
    k_img, k_meta, k_params = jax.random.split(key, 3)

    img = jax.random.normal(k_img, (B, IMG_DIM), jnp.float32)
    meta = jax.random.normal(k_meta, (B, META_DIM), jnp.float32)
    params = init_params(k_params, IMG_DIM, META_DIM)

    out = metacaru_bn(img, meta, params)
    out = jax.block_until_ready(out)

    ref = metacaru_bn_ref(img, meta, params)
    assert out.shape == (B, IMG_DIM)
    assert jnp.allclose(out, ref, atol=2e-4, rtol=2e-4), "mismatch vs reference"

    print("KERNEL_OK")
</pallas_src>

<mosaic_0001>
module attributes {stable_mosaic.version = 11 : i64} {
  func.func @metacaru_kernel(%arg0: i32, %arg1: memref<8x32xf32, #tpu.memory_space<vmem>>, %arg2: memref<8x16xf32, #tpu.memory_space<vmem>>, %arg3: memref<8x32xf32, #tpu.memory_space<vmem>>, %arg4: memref<32x64xf32, #tpu.memory_space<vmem>>, %arg5: memref<16x64xf32, #tpu.memory_space<vmem>>, %arg6: memref<8x64xf32, #tpu.memory_space<vmem>>, %arg7: memref<8x32xf32, #tpu.memory_space<vmem>>) attributes {dimension_semantics = [#tpu.dimension_semantics<parallel>], iteration_bounds = array<i64: 1>, scalar_prefetch = 0 : i64, scratch_operands = 0 : i64, tpu.core_type = #tpu.core_type<tc>, window_params = [{pipeline_mode = #tpu.pipeline_mode<synchronous>, transform_indices = @transform_0, window_bounds = array<i64: 8, 32>}, {pipeline_mode = #tpu.pipeline_mode<synchronous>, transform_indices = @transform_1, window_bounds = array<i64: 8, 16>}, {transform_indices = @transform_2, window_bounds = array<i64: 8, 32>}, {transform_indices = @transform_3, window_bounds = array<i64: 32, 64>}, {transform_indices = @transform_4, window_bounds = array<i64: 16, 64>}, {transform_indices = @transform_5, window_bounds = array<i64: 8, 64>}, {transform_indices = @transform_6, window_bounds = array<i64: 8, 32>}]} {
    %c0 = arith.constant 0 : index
    %c0_0 = arith.constant 0 : index
    %0 = vector.load %arg1[%c0, %c0_0] : memref<8x32xf32, #tpu.memory_space<vmem>>, vector<8x32xf32>
    %c0_1 = arith.constant 0 : index
    %c0_2 = arith.constant 0 : index
    %1 = vector.load %arg2[%c0_1, %c0_2] : memref<8x16xf32, #tpu.memory_space<vmem>>, vector<8x16xf32>
    %c0_3 = arith.constant 0 : index
    %c0_4 = arith.constant 0 : index
    %2 = vector.load %arg3[%c0_3, %c0_4] : memref<8x32xf32, #tpu.memory_space<vmem>>, vector<8x32xf32>
    %c0_5 = arith.constant 0 : index
    %c0_6 = arith.constant 0 : index
    %3 = vector.load %arg6[%c0_5, %c0_6] : memref<8x64xf32, #tpu.memory_space<vmem>>, vector<8x64xf32>
    %4 = vector.extract_strided_slice %3 {offsets = [0, 0], sizes = [1, 64], strides = [1, 1]} : vector<8x64xf32> to vector<1x64xf32>
    %5 = vector.extract_strided_slice %3 {offsets = [1, 0], sizes = [1, 64], strides = [1, 1]} : vector<8x64xf32> to vector<1x64xf32>
    %6 = vector.extract_strided_slice %3 {offsets = [2, 0], sizes = [1, 64], strides = [1, 1]} : vector<8x64xf32> to vector<1x64xf32>
    %7 = vector.extract_strided_slice %3 {offsets = [3, 0], sizes = [1, 64], strides = [1, 1]} : vector<8x64xf32> to vector<1x64xf32>
    %8 = vector.extract_strided_slice %3 {offsets = [4, 0], sizes = [1, 64], strides = [1, 1]} : vector<8x64xf32> to vector<1x64xf32>
    %9 = vector.extract_strided_slice %3 {offsets = [5, 0], sizes = [1, 64], strides = [1, 1]} : vector<8x64xf32> to vector<1x64xf32>
    %10 = vector.extract_strided_slice %3 {offsets = [6, 0], sizes = [1, 32], strides = [1, 1]} : vector<8x64xf32> to vector<1x32xf32>
    %11 = vector.extract_strided_slice %3 {offsets = [7, 0], sizes = [1, 32], strides = [1, 1]} : vector<8x64xf32> to vector<1x32xf32>
    %c0_7 = arith.constant 0 : index
    %c0_8 = arith.constant 0 : index
    %12 = vector.load %arg4[%c0_7, %c0_8] : memref<32x64xf32, #tpu.memory_space<vmem>>, vector<32x64xf32>
    %c0_9 = arith.constant 0 : index
    %c0_10 = arith.constant 0 : index
    %13 = vector.load %arg5[%c0_9, %c0_10] : memref<16x64xf32, #tpu.memory_space<vmem>>, vector<16x64xf32>
    %cst = arith.constant dense<0.000000e+00> : vector<8x64xf32>
    %14 = tpu.matmul %0, %12, %cst {dimension_numbers = #tpu.dot_dimension_numbers<[1], [0], [0], [1], [0, 0, 1, 1], [], []>} : vector<8x32xf32>, vector<32x64xf32>, vector<8x64xf32> -> vector<8x64xf32>
    %15 = vector.broadcast %4 : vector<1x64xf32> to vector<8x64xf32>
    %16 = arith.addf %14, %15 : vector<8x64xf32>
    %cst_11 = arith.constant dense<0.000000e+00> : vector<8x64xf32>
    %17 = tpu.matmul %1, %13, %cst_11 {dimension_numbers = #tpu.dot_dimension_numbers<[1], [0], [0], [1], [0, 0, 1, 1], [], []>} : vector<8x16xf32>, vector<16x64xf32>, vector<8x64xf32> -> vector<8x64xf32>
    %18 = vector.broadcast %5 : vector<1x64xf32> to vector<8x64xf32>
    %19 = arith.addf %17, %18 : vector<8x64xf32>
    %cst_12 = arith.constant dense<0.000000e+00> : vector<64xf32>
    %20 = vector.multi_reduction <add>, %16, %cst_12 [0] : vector<8x64xf32> to vector<64xf32>
    %21 = vector.shape_cast %20 : vector<64xf32> to vector<1x64xf32>
    %22 = arith.mulf %16, %16 : vector<8x64xf32>
    %cst_13 = arith.constant dense<0.000000e+00> : vector<64xf32>
    %23 = vector.multi_reduction <add>, %22, %cst_13 [0] : vector<8x64xf32> to vector<64xf32>
    %24 = vector.shape_cast %23 : vector<64xf32> to vector<1x64xf32>
    %cst_14 = arith.constant 1.250000e-01 : f32
    %25 = vector.broadcast %cst_14 : f32 to vector<1x64xf32>
    %26 = arith.mulf %21, %25 : vector<1x64xf32>
    %cst_15 = arith.constant 1.250000e-01 : f32
    %27 = vector.broadcast %cst_15 : f32 to vector<1x64xf32>
    %28 = arith.mulf %24, %27 : vector<1x64xf32>
    %29 = arith.mulf %26, %26 : vector<1x64xf32>
    %30 = arith.subf %28, %29 : vector<1x64xf32>
    %31 = vector.broadcast %26 : vector<1x64xf32> to vector<8x64xf32>
    %32 = arith.subf %16, %31 : vector<8x64xf32>
    %cst_16 = arith.constant 9.99999974E-6 : f32
    %33 = vector.broadcast %cst_16 : f32 to vector<1x64xf32>
    %34 = arith.addf %30, %33 : vector<1x64xf32>
    %35 = math.rsqrt %34 : vector<1x64xf32>
    %36 = vector.broadcast %35 : vector<1x64xf32> to vector<8x64xf32>
    %37 = arith.mulf %32, %36 : vector<8x64xf32>
    %38 = vector.broadcast %6 : vector<1x64xf32> to vector<8x64xf32>
    %39 = arith.mulf %37, %38 : vector<8x64xf32>
    %40 = vector.broadcast %8 : vector<1x64xf32> to vector<8x64xf32>
    %41 = arith.addf %39, %40 : vector<8x64xf32>
    %cst_17 = arith.constant dense<0.000000e+00> : vector<64xf32>
    %42 = vector.multi_reduction <add>, %19, %cst_17 [0] : vector<8x64xf32> to vector<64xf32>
    %43 = vector.shape_cast %42 : vector<64xf32> to vector<1x64xf32>
    %44 = arith.mulf %19, %19 : vector<8x64xf32>
    %cst_18 = arith.constant dense<0.000000e+00> : vector<64xf32>
    %45 = vector.multi_reduction <add>, %44, %cst_18 [0] : vector<8x64xf32> to vector<64xf32>
    %46 = vector.shape_cast %45 : vector<64xf32> to vector<1x64xf32>
    %cst_19 = arith.constant 1.250000e-01 : f32
    %47 = vector.broadcast %cst_19 : f32 to vector<1x64xf32>
    %48 = arith.mulf %43, %47 : vector<1x64xf32>
    %cst_20 = arith.constant 1.250000e-01 : f32
    %49 = vector.broadcast %cst_20 : f32 to vector<1x64xf32>
    %50 = arith.mulf %46, %49 : vector<1x64xf32>
    %51 = arith.mulf %48, %48 : vector<1x64xf32>
    %52 = arith.subf %50, %51 : vector<1x64xf32>
    %53 = vector.broadcast %48 : vector<1x64xf32> to vector<8x64xf32>
    %54 = arith.subf %19, %53 : vector<8x64xf32>
    %cst_21 = arith.constant 9.99999974E-6 : f32
    %55 = vector.broadcast %cst_21 : f32 to vector<1x64xf32>
    %56 = arith.addf %52, %55 : vector<1x64xf32>
    %57 = math.rsqrt %56 : vector<1x64xf32>
    %58 = vector.broadcast %57 : vector<1x64xf32> to vector<8x64xf32>
    %59 = arith.mulf %54, %58 : vector<8x64xf32>
    %60 = vector.broadcast %7 : vector<1x64xf32> to vector<8x64xf32>
    %61 = arith.mulf %59, %60 : vector<8x64xf32>
    %62 = vector.broadcast %9 : vector<1x64xf32> to vector<8x64xf32>
    %63 = arith.addf %61, %62 : vector<8x64xf32>
    %64 = vector.extract_strided_slice %41 {offsets = [0, 0], sizes = [8, 32], strides = [1, 1]} : vector<8x64xf32> to vector<8x32xf32>
    %65 = vector.extract_strided_slice %41 {offsets = [0, 32], sizes = [8, 32], strides = [1, 1]} : vector<8x64xf32> to vector<8x32xf32>
    %66 = vector.extract_strided_slice %63 {offsets = [0, 0], sizes = [8, 32], strides = [1, 1]} : vector<8x64xf32> to vector<8x32xf32>
    %67 = vector.extract_strided_slice %63 {offsets = [0, 32], sizes = [8, 32], strides = [1, 1]} : vector<8x64xf32> to vector<8x32xf32>
    %68 = arith.addf %64, %66 : vector<8x32xf32>
    %69 = math.tanh %68 : vector<8x32xf32>
    %70 = arith.addf %67, %65 : vector<8x32xf32>
    %71 = arith.negf %70 : vector<8x32xf32>
    %72 = math.exp %71 : vector<8x32xf32>
    %cst_22 = arith.constant 1.000000e+00 : f32
    %73 = vector.broadcast %cst_22 : f32 to vector<8x32xf32>
    %74 = arith.addf %73, %72 : vector<8x32xf32>
    %75 = arith.divf %73, %74 : vector<8x32xf32>
    %76 = arith.negf %66 : vector<8x32xf32>
    %77 = math.exp %76 : vector<8x32xf32>
    %cst_23 = arith.constant 1.000000e+00 : f32
    %78 = vector.broadcast %cst_23 : f32 to vector<8x32xf32>
    %79 = arith.addf %78, %77 : vector<8x32xf32>
    %80 = arith.divf %78, %79 : vector<8x32xf32>
    %81 = arith.mulf %80, %75 : vector<8x32xf32>
    %cst_24 = arith.constant 1.000000e+00 : f32
    %82 = vector.broadcast %cst_24 : f32 to vector<8x32xf32>
    %83 = arith.subf %82, %81 : vector<8x32xf32>
    %84 = arith.mulf %83, %2 : vector<8x32xf32>
    %85 = arith.mulf %81, %69 : vector<8x32xf32>
    %86 = arith.addf %84, %85 : vector<8x32xf32>
    %cst_25 = arith.constant dense<0.000000e+00> : vector<32xf32>
    %87 = vector.multi_reduction <add>, %86, %cst_25 [0] : vector<8x32xf32> to vector<32xf32>
    %88 = vector.shape_cast %87 : vector<32xf32> to vector<1x32xf32>
    %89 = arith.mulf %86, %86 : vector<8x32xf32>
    %cst_26 = arith.constant dense<0.000000e+00> : vector<32xf32>
    %90 = vector.multi_reduction <add>, %89, %cst_26 [0] : vector<8x32xf32> to vector<32xf32>
    %91 = vector.shape_cast %90 : vector<32xf32> to vector<1x32xf32>
    %cst_27 = arith.constant 1.250000e-01 : f32
    %92 = vector.broadcast %cst_27 : f32 to vector<1x32xf32>
    %93 = arith.mulf %88, %92 : vector<1x32xf32>
    %cst_28 = arith.constant 1.250000e-01 : f32
    %94 = vector.broadcast %cst_28 : f32 to vector<1x32xf32>
    %95 = arith.mulf %91, %94 : vector<1x32xf32>
    %96 = arith.mulf %93, %93 : vector<1x32xf32>
    %97 = arith.subf %95, %96 : vector<1x32xf32>
    %98 = vector.broadcast %93 : vector<1x32xf32> to vector<8x32xf32>
    %99 = arith.subf %86, %98 : vector<8x32xf32>
    %cst_29 = arith.constant 9.99999974E-6 : f32
    %100 = vector.broadcast %cst_29 : f32 to vector<1x32xf32>
    %101 = arith.addf %97, %100 : vector<1x32xf32>
    %102 = math.rsqrt %101 : vector<1x32xf32>
    %103 = vector.broadcast %102 : vector<1x32xf32> to vector<8x32xf32>
    %104 = arith.mulf %99, %103 : vector<8x32xf32>
    %105 = vector.broadcast %10 : vector<1x32xf32> to vector<8x32xf32>
    %106 = arith.mulf %104, %105 : vector<8x32xf32>
    %107 = vector.broadcast %11 : vector<1x32xf32> to vector<8x32xf32>
    %108 = arith.addf %106, %107 : vector<8x32xf32>
    %c0_30 = arith.constant 0 : index
    %c0_31 = arith.constant 0 : index
    %109 = vector.load %arg7[%c0_30, %c0_31] : memref<8x32xf32, #tpu.memory_space<vmem>>, vector<8x32xf32>
    tpu.vector_store %arg7[%c0_30, %c0_31], %108 {strides = array<i32>} : memref<8x32xf32, #tpu.memory_space<vmem>>, vector<8x32xf32>,
    return
  }
  func.func @transform_0(%arg0: i32) -> (i32, i32) {
    %c0_i32 = arith.constant 0 : i32
    %c0_i32_0 = arith.constant 0 : i32
    %c0_i32_1 = arith.constant 0 : i32
    return %c0_i32, %c0_i32_0 : i32, i32
  }
  func.func @transform_1(%arg0: i32) -> (i32, i32) {
    %c0_i32 = arith.constant 0 : i32
    %c0_i32_0 = arith.constant 0 : i32
    %c0_i32_1 = arith.constant 0 : i32
    return %c0_i32, %c0_i32_0 : i32, i32
  }
  func.func @transform_2(%arg0: i32) -> (i32, i32) {
    %c0_i32 = arith.constant 0 : i32
    %c0_i32_0 = arith.constant 0 : i32
    return %c0_i32, %arg0 : i32, i32
  }
  func.func @transform_3(%arg0: i32) -> (i32, i32) {
    %c0_i32 = arith.constant 0 : i32
    %c0_i32_0 = arith.constant 0 : i32
    return %c0_i32, %arg0 : i32, i32
  }
  func.func @transform_4(%arg0: i32) -> (i32, i32) {
    %c0_i32 = arith.constant 0 : i32
    %c0_i32_0 = arith.constant 0 : i32
    return %c0_i32, %arg0 : i32, i32
  }
  func.func @transform_5(%arg0: i32) -> (i32, i32) {
    %c0_i32 = arith.constant 0 : i32
    %c0_i32_0 = arith.constant 0 : i32
    return %c0_i32, %arg0 : i32, i32
  }
  func.func @transform_6(%arg0: i32) -> (i32, i32) {
    %c0_i32 = arith.constant 0 : i32
    %c0_i32_0 = arith.constant 0 : i32
    return %c0_i32, %arg0 : i32, i32
  }
}

</mosaic_0001>

<llo_original>
// kernel: metacaru_bn.1
$region0: #{metacaru_bn.1}
  #allocation0 [shape = 'u32[]', space=smem, size = 0x4, offset = 0x4, fixed_abs, tag = 'smem constant byte address 0x4 - core index']
  #allocation1 [shape = 'u32[144,128]{1,0:T(1,128)}', space=vmem, size = 0x12000, scoped, tag = 'internal scratch']
  %s0 = inlined_call_operand.vmem [shape: f32[8,32], index: 0, kind: input, shape index: {}, may-alias: {0,2}]
  %s1 = inlined_call_operand.vmem [shape: f32[8,16], index: 1, kind: input, shape index: {}]
  %s2 = inlined_call_operand.vmem [shape: f32[8,32], index: 2, kind: input, shape index: {}, may-alias: {0,2}]
  %s3 = inlined_call_operand.vmem [shape: f32[32,64], index: 3, kind: input, shape index: {}]
  %s4 = inlined_call_operand.vmem [shape: f32[16,64], index: 4, kind: input, shape index: {}]
  %s5 = inlined_call_operand.vmem [shape: f32[8,64], index: 5, kind: input, shape index: {}]
  %s6 = inlined_call_operand.hbm [shape: f32[8,32], index: 6, kind: output, shape index: {}]
  %s7 = sld [smem:[#allocation0]]
  $region34: #{metacaru_bn.1} parent=0
    _
  %s9 = ssub.s32 1, %s7
  %s10 = scalar_select 0, %s9, %s7
  $region1: #{metacaru_bn.1} parent=0
    #allocation2 [shape = 'u8[4096]{0}', space=vmem, size = 0x1000, scoped, tag = 'output window, operand 0, single buffered']
    #allocation3 [shape = 's32[1]{0}', space=sflag, size = 0x4, scoped, tag = 'scoped memory for metacaru_bn.1']
    %11 = vsyncpa [#allocation3], 0
    // Predicated region
    $region2: #{metacaru_bn.1} parent=1 // pred_check
      _
    $region3: #{metacaru_bn.1} parent=1 // pred_check_branch
      %13 = sbr.rel (0) target = $region5
    $region4: #{metacaru_bn.1} parent=1 // pred_region
      _
    $region5: #{metacaru_bn.1} parent=1 // pred_fallthru
      _
    // Predicated region
    $region6: #{metacaru_bn.1} parent=1 // pred_check
      _
    $region7: #{metacaru_bn.1} parent=1 // pred_check_branch
      %15 = sbr.rel (0) target = $region9
    $region8: #{metacaru_bn.1} parent=1 // pred_region
      _
    $region9: #{metacaru_bn.1} parent=1 // pred_fallthru
      _
    // Predicated region
    $region10: #{metacaru_bn.1} parent=1 // pred_check
      _
    $region11: #{metacaru_bn.1} parent=1 // pred_check_branch
      %17 = sbr.rel (0) target = $region13
    $region12: #{metacaru_bn.1} parent=1 // pred_region
      _
    $region13: #{metacaru_bn.1} parent=1 // pred_fallthru
      _
    // Predicated region
    $region14: #{metacaru_bn.1} parent=1 // pred_check
      _
    $region15: #{metacaru_bn.1} parent=1 // pred_check_branch
      %19 = sbr.rel (0) target = $region17
    $region16: #{metacaru_bn.1} parent=1 // pred_region
      _
    $region17: #{metacaru_bn.1} parent=1 // pred_fallthru
      _
    // Predicated region
    $region18: #{metacaru_bn.1} parent=1 // pred_check
      _
    $region19: #{metacaru_bn.1} parent=1 // pred_check_branch
      %21 = sbr.rel (0) target = $region21
    $region20: #{metacaru_bn.1} parent=1 // pred_region
      _
    $region21: #{metacaru_bn.1} parent=1 // pred_fallthru
      _
    // Predicated region
    $region22: #{metacaru_bn.1} parent=1 // pred_check
      _
    $region23: #{metacaru_bn.1} parent=1 // pred_check_branch
      %23 = sbr.rel (0) target = $region25
    $region24: #{metacaru_bn.1} parent=1 // pred_region
      _
    $region25: #{metacaru_bn.1} parent=1 // pred_fallthru
      _
    %v24 = vld [vmem:[%s0] sm:$0xff]
    %v25 = vld [vmem:[%s1] sm:$0xff]
    %v26 = vld [vmem:[%s2] sm:$0xff]
    %v27 = vld [vmem:[%s5] sm:$0xff]
    %v28 = vld [vmem:[%s3] sm:$0xff]
    %v29 = vld [vmem:[%s3 + $0x8] sm:$0xff]
    %v30 = vld [vmem:[%s3 + $0x10] sm:$0xff]
    %v31 = vld [vmem:[%s3 + $0x18] sm:$0xff]
    %v32 = vld [vmem:[%s4] sm:$0xff]
    %v33 = vld [vmem:[%s4 + $0x8] sm:$0xff]
    %v34 = vlaneseq
    %v35 = vshrl.u32 %v34, 7
    %v36 = vsub.s32 0, %v35
    %v37 = vrot.slane %v27, %v36
    %vm38 = vcmask 261120
    %v40 = vsel %vm38, %v24, 0
    %42 = vmatprep.subr.mxu0 0.0
    %43 = vmatpush1.msra.mxu0 0.0
    %44 = vmatprep.subr.mxu0 0.0
    %45 = vmatpush1.msra.mxu0 0.0
    %46 = vmatprep.subr.mxu0 0.0
    %47 = vmatpush1.msra.mxu0 0.0
    %48 = vmatprep.subr.mxu0 0.0
    %49 = vmatpush1.msra.mxu0 0.0
    %50 = vmatprep.subr.mxu0 0.0
    %51 = vmatpush1.msra.mxu0 0.0
    %52 = vmatprep.subr.mxu0 0.0
    %53 = vmatpush1.msra.mxu0 0.0
    %54 = vmatprep.subr.mxu0 0.0
    %55 = vmatpush1.msra.mxu0 0.0
    %56 = vmatprep.subr.mxu0 0.0
    %57 = vmatpush1.msra.mxu0 0.0
    %58 = vmatprep.subr.mxu0 0.0
    %59 = vmatpush1.msra.mxu0 0.0
    %60 = vmatprep.subr.mxu0 0.0
    %61 = vmatpush1.msra.mxu0 0.0
    %62 = vmatprep.subr.mxu0 0.0
    %63 = vmatpush1.msra.mxu0 0.0
    %64 = vmatprep.subr.mxu0 0.0
    %65 = vmatpush1.msra.mxu0 0.0
    %66 = vmatprep.subr.mxu0 0.0
    %67 = vmatpush1.msra.mxu0 %v31
    %68 = vmatprep.subr.mxu0 0.0
    %69 = vmatpush1.msra.mxu0 %v30
    %70 = vmatprep.subr.mxu0 0.0
    %71 = vmatpush1.msra.mxu0 %v29
    %72 = vmatprep.subr.mxu0 0.0
    %73 = vmatpush1.msra.mxu0 %v28
    %74 = vmatprep.subr.mxu0 0.0
    %75 = vmatpush2.msra.mxu0 0.0
    %76 = vmatprep.subr.mxu0 0.0
    %77 = vmatpush2.msra.mxu0 0.0
    %78 = vmatprep.subr.mxu0 0.0
    %79 = vmatpush2.msra.mxu0 0.0
    %80 = vmatprep.subr.mxu0 0.0
    %81 = vmatpush2.msra.mxu0 0.0
    %82 = vmatprep.subr.mxu0 0.0
    %83 = vmatpush2.msra.mxu0 0.0
    %84 = vmatprep.subr.mxu0 0.0
    %85 = vmatpush2.msra.mxu0 0.0
    %86 = vmatprep.subr.mxu0 0.0
    %87 = vmatpush2.msra.mxu0 0.0
    %88 = vmatprep.subr.mxu0 0.0
    %89 = vmatpush2.msra.mxu0 0.0
    %90 = vmatprep.subr.mxu0 0.0
    %91 = vmatpush2.msra.mxu0 0.0
    %92 = vmatprep.subr.mxu0 0.0
    %93 = vmatpush2.msra.mxu0 0.0
    %94 = vmatprep.subr.mxu0 0.0
    %95 = vmatpush2.msra.mxu0 0.0
    %96 = vmatprep.subr.mxu0 0.0
    %97 = vmatpush2.msra.mxu0 0.0
    %98 = vmatprep.subr.mxu0 0.0
    %99 = vmatpush2.msra.mxu0 0.0
    %100 = vmatprep.subr.mxu0 0.0
    %101 = vmatpush2.msra.mxu0 0.0
    %102 = vmatprep.subr.mxu0 0.0
    %103 = vmatpush2.msra.mxu0 0.0
    %104 = vmatprep.subr.mxu0 0.0
    %105 = vmatpush2.msra.mxu0 0.0
    %106 = vmatprep.mubr.f32.mxu0 0.0
    %107 = vmatmul.mubr.f32.gmra.mxu0 %v40
    %v108 = vpop.f32.mrf.mxu0
    %v109 = vadd.f32 %v37, %v108
    %v110 = vpop.f32.mrf.mxu0
    %111 = vdwg.mxu0
    %v112 = vlaneseq
    %v113 = vshrl.u32 %v112, 7
    %v114 = vsub.s32 1, %v113
    %v115 = vrot.slane %v27, %v114
    %vm116 = vcmask 130048
    %v118 = vsel %vm116, %v25, 0
    %120 = vmatprep.subr.mxu0 0.0
    %121 = vmatpush1.msra.mxu0 0.0
    %122 = vmatprep.subr.mxu0 0.0
    %123 = vmatpush1.msra.mxu0 0.0
    %124 = vmatprep.subr.mxu0 0.0
    %125 = vmatpush1.msra.mxu0 0.0
    %126 = vmatprep.subr.mxu0 0.0
    %127 = vmatpush1.msra.mxu0 0.0
    %128 = vmatprep.subr.mxu0 0.0
    %129 = vmatpush1.msra.mxu0 0.0
    %130 = vmatprep.subr.mxu0 0.0
    %131 = vmatpush1.msra.mxu0 0.0
    %132 = vmatprep.subr.mxu0 0.0
    %133 = vmatpush1.msra.mxu0 0.0
    %134 = vmatprep.subr.mxu0 0.0
    %135 = vmatpush1.msra.mxu0 0.0
    %136 = vmatprep.subr.mxu0 0.0
    %137 = vmatpush1.msra.mxu0 0.0
    %138 = vmatprep.subr.mxu0 0.0
    %139 = vmatpush1.msra.mxu0 0.0
    %140 = vmatprep.subr.mxu0 0.0
    %141 = vmatpush1.msra.mxu0 0.0
    %142 = vmatprep.subr.mxu0 0.0
    %143 = vmatpush1.msra.mxu0 0.0
    %144 = vmatprep.subr.mxu0 0.0
    %145 = vmatpush1.msra.mxu0 0.0
    %146 = vmatprep.subr.mxu0 0.0
    %147 = vmatpush1.msra.mxu0 0.0
    %148 = vmatprep.subr.mxu0 0.0
    %149 = vmatpush1.msra.mxu0 %v33
    %150 = vmatprep.subr.mxu0 0.0
    %151 = vmatpush1.msra.mxu0 %v32
    %152 = vmatprep.subr.mxu0 0.0
    %153 = vmatpush2.msra.mxu0 0.0
    %154 = vmatprep.subr.mxu0 0.0
    %155 = vmatpush2.msra.mxu0 0.0
    %156 = vmatprep.subr.mxu0 0.0
    %157 = vmatpush2.msra.mxu0 0.0
    %158 = vmatprep.subr.mxu0 0.0
    %159 = vmatpush2.msra.mxu0 0.0
    %160 = vmatprep.subr.mxu0 0.0
    %161 = vmatpush2.msra.mxu0 0.0
    %162 = vmatprep.subr.mxu0 0.0
    %163 = vmatpush2.msra.mxu0 0.0
    %164 = vmatprep.subr.mxu0 0.0
    %165 = vmatpush2.msra.mxu0 0.0
    %166 = vmatprep.subr.mxu0 0.0
    %167 = vmatpush2.msra.mxu0 0.0
    %168 = vmatprep.subr.mxu0 0.0
    %169 = vmatpush2.msra.mxu0 0.0
    %170 = vmatprep.subr.mxu0 0.0
    %171 = vmatpush2.msra.mxu0 0.0
    %172 = vmatprep.subr.mxu0 0.0
    %173 = vmatpush2.msra.mxu0 0.0
    %174 = vmatprep.subr.mxu0 0.0
    %175 = vmatpush2.msra.mxu0 0.0
    %176 = vmatprep.subr.mxu0 0.0
    %177 = vmatpush2.msra.mxu0 0.0
    %178 = vmatprep.subr.mxu0 0.0
    %179 = vmatpush2.msra.mxu0 0.0
    %180 = vmatprep.subr.mxu0 0.0
    %181 = vmatpush2.msra.mxu0 0.0
    %182 = vmatprep.subr.mxu0 0.0
    %183 = vmatpush2.msra.mxu0 0.0
    %184 = vmatprep.mubr.f32.mxu0 0.0
    %185 = vmatmul.mubr.f32.gmra.mxu0 %v118
    %v186 = vpop.f32.mrf.mxu0
    %v187 = vadd.f32 %v115, %v186
    %v188 = vpop.f32.mrf.mxu0
    %189 = vdwg.mxu0
    %vm190 = vcmask 523264
    %v191 = vsel %vm190, %v109, 0.0
    %v192 = vrot.slane %v191, 4
    %v193 = vadd.f32 %v191, %v192
    %v194 = vrot.slane %v193, 2
    %v195 = vadd.f32 %v193, %v194
    %v196 = vrot.slane %v195, 1
    %v197 = vadd.f32 %v195, %v196
    %v198 = vmul.f32 %v109, %v109
    %v199 = vsel %vm190, %v198, 0.0
    %v200 = vrot.slane %v199, 4
    %v201 = vadd.f32 %v199, %v200
    %v202 = vrot.slane %v201, 2
    %v203 = vadd.f32 %v201, %v202
    %v204 = vrot.slane %v203, 1
    %v205 = vadd.f32 %v203, %v204
    %v206 = vmul.f32 %v197, 0.125
    %v207 = vmul.f32 %v205, 0.125
    %v208 = vmul.f32 %v206, %v206
    %v209 = vsub.f32 %v207, %v208
    %v210 = vsub.f32 %v109, %v206
    %v211 = vadd.f32 %v209, 1e-05
    %v212 = vrsqrt.pop %v211
    %v213 = vmul.f32 %v210, %v212
    %v214 = vlaneseq
    %v215 = vshrl.u32 %v214, 7
    %v216 = vsub.s32 2, %v215
    %v217 = vrot.slane %v27, %v216
    %v218 = vmul.f32 %v213, %v217
    %v219 = vlaneseq
    %v220 = vshrl.u32 %v219, 7
    %v221 = vsub.s32 4, %v220
    %v222 = vrot.slane %v27, %v221
    %v223 = vadd.f32 %v218, %v222
    %v224 = vsel %vm190, %v187, 0.0
    %v225 = vrot.slane %v224, 4
    %v226 = vadd.f32 %v224, %v225
    %v227 = vrot.slane %v226, 2
    %v228 = vadd.f32 %v226, %v227
    %v229 = vrot.slane %v228, 1
    %v230 = vadd.f32 %v228, %v229
    %v231 = vmul.f32 %v187, %v187
    %v232 = vsel %vm190, %v231, 0.0
    %v233 = vrot.slane %v232, 4
    %v234 = vadd.f32 %v232, %v233
    %v235 = vrot.slane %v234, 2
    %v236 = vadd.f32 %v234, %v235
    %v237 = vrot.slane %v236, 1
    %v238 = vadd.f32 %v236, %v237
    %v239 = vmul.f32 %v230, 0.125
    %v240 = vmul.f32 %v238, 0.125
    %v241 = vmul.f32 %v239, %v239
    %v242 = vsub.f32 %v240, %v241
    %v243 = vsub.f32 %v187, %v239
    %v244 = vadd.f32 %v242, 1e-05
    %v245 = vrsqrt.pop %v244
    %v246 = vmul.f32 %v243, %v245
    %v247 = vlaneseq
    %v248 = vshrl.u32 %v247, 7
    %v249 = vsub.s32 3, %v248
    %v250 = vrot.slane %v27, %v249
    %v251 = vmul.f32 %v246, %v250
    %v252 = vlaneseq
    %v253 = vshrl.u32 %v252, 7
    %v254 = vsub.s32 5, %v253
    %v255 = vrot.slane %v27, %v254
    %v256 = vadd.f32 %v251, %v255
    %v257 = vadd.f32 %v223, %v256
    %v258 = vtanh.pop %v257
    %v259 = vxor.u32 %v257, 2147483648
    %v260 = vmul.f32 %v259, 1.442695
    %v261 = vpow.pop %v260
    %v262 = vadd.f32 %v261, 1.0
    %v263 = vrcp.pop %v262
    %v264 = vmul.f32 1.0, %v263
    %v265 = vxor.u32 %v256, 2147483648
    %v266 = vmul.f32 %v265, 1.442695
    %v267 = vpow.pop %v266
    %v268 = vadd.f32 %v267, 1.0
    %v269 = vrcp.pop %v268
    %v270 = vmul.f32 1.0, %v269
    %272 = vrot.lane.b32.xlu0 %v264, 96
    %v273 = vpop.permute.xlu0 %272
    %v275 = vmul.f32 %v270, %v273
    %v276 = vsub.f32 1.0, %v275
    %v277 = vmul.f32 %v276, %v26
    %v278 = vmul.f32 %v275, %v258
    %v279 = vadd.f32 %v277, %v278
    %v280 = vsel %vm38, %v279, 0.0
    %v281 = vrot.slane %v280, 4
    %v282 = vadd.f32 %v280, %v281
    %v283 = vrot.slane %v282, 2
    %v284 = vadd.f32 %v282, %v283
    %v285 = vrot.slane %v284, 1
    %v286 = vadd.f32 %v284, %v285
    %v287 = vmul.f32 %v279, %v279
    %v288 = vsel %vm38, %v287, 0.0
    %v289 = vrot.slane %v288, 4
    %v290 = vadd.f32 %v288, %v289
    %v291 = vrot.slane %v290, 2
    %v292 = vadd.f32 %v290, %v291
    %v293 = vrot.slane %v292, 1
    %v294 = vadd.f32 %v292, %v293
    %v295 = vmul.f32 %v286, 0.125
    %v296 = vmul.f32 %v294, 0.125
    %v297 = vmul.f32 %v295, %v295
    %v298 = vsub.f32 %v296, %v297
    %v299 = vsub.f32 %v279, %v295
    %v300 = vadd.f32 %v298, 1e-05
    %v301 = vrsqrt.pop %v300
    %v302 = vmul.f32 %v299, %v301
    %v303 = vlaneseq
    %v304 = vshrl.u32 %v303, 7
    %v305 = vsub.s32 6, %v304
    %v306 = vrot.slane %v27, %v305
    %v307 = vmul.f32 %v302, %v306
    %v308 = vlaneseq
    %v309 = vshrl.u32 %v308, 7
    %v310 = vsub.s32 7, %v309
    %v311 = vrot.slane %v27, %v310
    %v312 = vadd.f32 %v307, %v311
    %313 = vst.msk [vmem:[#allocation2] sm:$0xff] %vm38, %v312
    // Predicated region
    $region26: #{metacaru_bn.1} parent=1 // pred_check
      _
    $region27: #{metacaru_bn.1} parent=1 // pred_check_branch
      %315 = sbr.rel (0) target = $region29
    $region28: #{metacaru_bn.1} parent=1 // pred_region
      %s317 = ssub.s32 128, 128
      %318 = vsyncadd [#allocation3], %s317
      %s320 = sshll.u32 [#allocation2], 4
      %s321 = int_to_ptr.vmem [resolvable:$true] %s320
      %323 = dma.vmem_to_hbm [thread:$0]  %s321, 128, %s6, [#allocation3]
    $region29: #{metacaru_bn.1} parent=1 // pred_fallthru
      _
    // Predicated region
    $region30: #{metacaru_bn.1} parent=1 // pred_check
      _
    $region31: #{metacaru_bn.1} parent=1 // pred_check_branch
      %325 = sbr.rel (0) target = $region33
    $region32: #{metacaru_bn.1} parent=1 // pred_region
      %326 = dma.done [#allocation3], 128
    $region33: #{metacaru_bn.1} parent=1 // pred_fallthru
      _
    %327 = vsyncpa [#allocation3], 1

</llo_original>
